<compile_context>
chip_gen: v5e
topology: v5e:2x2
jax: 0.10.0
libtpu: 0.0.40
codegen_flags: <defaults>
</compile_context>

<pallas_src>
import functools
import math

import jax
import jax.numpy as jnp
from jax.experimental import pallas as pl
from jax.experimental.pallas import tpu as pltpu


def _fused_trunk_kernel(*refs, num_layers: int, use_bf16_inputs: bool):
    """refs = (x_T, W_0..W_{L-1}, b_0..b_{L-1}, out_T). All blocks in VMEM.

    x_T:  (in_dim, tm)        -- batch on lanes
    W_i:  (out_i, in_i)       -- PyTorch layout
    b_i:  (out_i, 1)
    out_T:(N_out, tm)
    """
    x_ref = refs[0]
    w_refs = refs[1:1 + num_layers]
    b_refs = refs[1 + num_layers:1 + 2 * num_layers]
    o_ref = refs[1 + 2 * num_layers]

    y = x_ref[...]                                   # (K, tm) f32
    for i in range(num_layers):
        w = w_refs[i][...]
        if use_bf16_inputs:
            # bf16 MXU inputs, f32 accumulation; bias/ReLU stay in f32.
            w = w.astype(jnp.bfloat16)
            y = y.astype(jnp.bfloat16)
        y = jnp.dot(w, y, preferred_element_type=jnp.float32)   # (out_i, tm)
        y = y + b_refs[i][...]                       # (out_i, 1) lane-broadcast
        if i < num_layers - 1:                       # no ReLU on the last layer
            y = jnp.maximum(y, 0.0)
    o_ref[...] = y.astype(o_ref.dtype)


def fc_trunk_forward(x: jax.Array, params, *, batch_tile: int = 1024,
                     use_bf16_inputs: bool = False) -> jax.Array:
    """FCTrunk.forward: fused Linear(+ReLU) chain in one Pallas kernel.

    params: list of (W[out, in], b[out]) in PyTorch layout.
    """
    if x.dtype != jnp.float32:
        x = x.astype(jnp.float32)      # single boundary cast (mirrors torch .float())

    num_layers = len(params)
    M, K = x.shape
    N_out = params[-1][0].shape[0]     # W is [out, in]
    ws = tuple(w for (w, _) in params)
    bs = tuple(b.reshape(-1, 1) for (_, b) in params)

    # Layout plumbing: present the batch on the lane axis.
    x_t = x.T                          # (K, M)

    kernel = functools.partial(_fused_trunk_kernel, num_layers=num_layers,
                               use_bf16_inputs=use_bf16_inputs)

    if M <= batch_tile:
        # Genuinely small batch: single fused invocation, whole arrays in VMEM,
        # no grid (no per-step pipeline overhead). VMEM use is trivially small.
        out_t = pl.pallas_call(
            kernel,
            out_shape=jax.ShapeDtypeStruct((N_out, M), jnp.float32),
        )(x_t, *ws, *bs)
        return out_t.T

    # Large batch: tile the (lane) batch axis. Pad M to a multiple of the tile
    # so there is never a whole-array fallback that could blow VMEM; the padded
    # columns compute harmless values and are sliced off afterwards.
    tm = batch_tile
    n_tiles = pl.cdiv(M, tm)
    m_pad = n_tiles * tm
    if m_pad != M:
        x_t = jnp.pad(x_t, ((0, 0), (0, m_pad - M)))

    in_specs = [pl.BlockSpec((K, tm), lambda i: (0, i))]
    # Grid-invariant operands: constant index maps -> not re-DMA'd per step.
    in_specs += [pl.BlockSpec(w.shape, lambda i: (0, 0)) for w in ws]
    in_specs += [pl.BlockSpec(b.shape, lambda i: (0, 0)) for b in bs]

    out_t = pl.pallas_call(
        kernel,
        out_shape=jax.ShapeDtypeStruct((N_out, m_pad), jnp.float32),
        grid=(n_tiles,),
        in_specs=in_specs,
        out_specs=pl.BlockSpec((N_out, tm), lambda i: (0, i)),
        compiler_params=pltpu.CompilerParams(
            dimension_semantics=("parallel",),
        ),
    )(x_t, *ws, *bs)

    return out_t[:, :M].T


def init_fc_trunk_params(key, in_dim: int, h):
    """Deterministic init mirroring nn.Linear's U(-1/sqrt(fan_in), 1/sqrt(fan_in)).

    Returns list of (W[out, in], b[out]) in PyTorch's native layout.
    """
    dims = [in_dim] + list(h)
    params = []
    for i in range(len(h)):
        fan_in, fan_out = dims[i], dims[i + 1]
        key, kw, kb = jax.random.split(key, 3)
        bound = 1.0 / math.sqrt(fan_in)
        w = jax.random.uniform(kw, (fan_out, fan_in), jnp.float32, -bound, bound)
        b = jax.random.uniform(kb, (fan_out,), jnp.float32, -bound, bound)
        params.append((w, b))
    return params


def _reference_forward(x, params):
    y = x.astype(jnp.float32)
    for i, (w, b) in enumerate(params):
        y = y @ w.T + b                      # PyTorch: x @ weight.T + bias
        if i < len(params) - 1:
            y = jnp.maximum(y, 0.0)
    return y


if __name__ == "__main__":
    key = jax.random.PRNGKey(0)
    in_dim = 8
    h = (32, 32, 16)                          # hidden sizes: FCTrunk(in_dim, h)
    batch = 2

    kx, kp, kx2 = jax.random.split(key, 3)
    x = jax.random.normal(kx, (batch, in_dim), dtype=jnp.float32)
    params = init_fc_trunk_params(kp, in_dim, h)

    # Small batch: single fused no-grid kernel (lane-transposed layout).
    out = jax.block_until_ready(fc_trunk_forward(x, params))
    ref = _reference_forward(x, params)
    assert out.shape == (batch, h[-1])
    assert jnp.allclose(out, ref, atol=1e-5, rtol=1e-5)

    # Larger, non-divisible batch: exercises the tiled grid path + padding.
    x_big = jax.random.normal(kx2, (1280, in_dim), dtype=jnp.float32)
    out_big = jax.block_until_ready(
        fc_trunk_forward(x_big, params, batch_tile=512))
    ref_big = _reference_forward(x_big, params)
    assert out_big.shape == (1280, h[-1])
    assert jnp.allclose(out_big, ref_big, atol=1e-4, rtol=1e-4)

    print("KERNEL_OK")
</pallas_src>

<mosaic_0001>
module attributes {stable_mosaic.version = 11 : i64} {
  func.func @_fused_trunk_kernel(%arg0: memref<8x2xf32, #tpu.memory_space<vmem>>, %arg1: memref<32x8xf32, #tpu.memory_space<vmem>>, %arg2: memref<32x32xf32, #tpu.memory_space<vmem>>, %arg3: memref<16x32xf32, #tpu.memory_space<vmem>>, %arg4: memref<32x1xf32, #tpu.memory_space<vmem>>, %arg5: memref<32x1xf32, #tpu.memory_space<vmem>>, %arg6: memref<16x1xf32, #tpu.memory_space<vmem>>, %arg7: memref<16x2xf32, #tpu.memory_space<vmem>>) attributes {dimension_semantics = [], scalar_prefetch = 0 : i64, scratch_operands = 0 : i64, tpu.core_type = #tpu.core_type<tc>} {
    %c0 = arith.constant 0 : index
    %c0_0 = arith.constant 0 : index
    %0 = vector.load %arg0[%c0, %c0_0] : memref<8x2xf32, #tpu.memory_space<vmem>>, vector<8x2xf32>
    %c0_1 = arith.constant 0 : index
    %c0_2 = arith.constant 0 : index
    %1 = vector.load %arg1[%c0_1, %c0_2] : memref<32x8xf32, #tpu.memory_space<vmem>>, vector<32x8xf32>
    %cst = arith.constant dense<0.000000e+00> : vector<32x2xf32>
    %2 = tpu.matmul %1, %0, %cst {dimension_numbers = #tpu.dot_dimension_numbers<[1], [0], [0], [1], [0, 0, 1, 1], [], []>} : vector<32x8xf32>, vector<8x2xf32>, vector<32x2xf32> -> vector<32x2xf32>
    %c0_3 = arith.constant 0 : index
    %c0_4 = arith.constant 0 : index
    %3 = vector.load %arg4[%c0_3, %c0_4] : memref<32x1xf32, #tpu.memory_space<vmem>>, vector<32x1xf32>
    %4 = vector.broadcast %3 : vector<32x1xf32> to vector<32x2xf32>
    %5 = arith.addf %2, %4 : vector<32x2xf32>
    %cst_5 = arith.constant 0.000000e+00 : f32
    %6 = vector.broadcast %cst_5 : f32 to vector<32x2xf32>
    %7 = arith.maximumf %5, %6 : vector<32x2xf32>
    %c0_6 = arith.constant 0 : index
    %c0_7 = arith.constant 0 : index
    %8 = vector.load %arg2[%c0_6, %c0_7] : memref<32x32xf32, #tpu.memory_space<vmem>>, vector<32x32xf32>
    %cst_8 = arith.constant dense<0.000000e+00> : vector<32x2xf32>
    %9 = tpu.matmul %8, %7, %cst_8 {dimension_numbers = #tpu.dot_dimension_numbers<[1], [0], [0], [1], [0, 0, 1, 1], [], []>} : vector<32x32xf32>, vector<32x2xf32>, vector<32x2xf32> -> vector<32x2xf32>
    %c0_9 = arith.constant 0 : index
    %c0_10 = arith.constant 0 : index
    %10 = vector.load %arg5[%c0_9, %c0_10] : memref<32x1xf32, #tpu.memory_space<vmem>>, vector<32x1xf32>
    %11 = vector.broadcast %10 : vector<32x1xf32> to vector<32x2xf32>
    %12 = arith.addf %9, %11 : vector<32x2xf32>
    %cst_11 = arith.constant 0.000000e+00 : f32
    %13 = vector.broadcast %cst_11 : f32 to vector<32x2xf32>
    %14 = arith.maximumf %12, %13 : vector<32x2xf32>
    %c0_12 = arith.constant 0 : index
    %c0_13 = arith.constant 0 : index
    %15 = vector.load %arg3[%c0_12, %c0_13] : memref<16x32xf32, #tpu.memory_space<vmem>>, vector<16x32xf32>
    %cst_14 = arith.constant dense<0.000000e+00> : vector<16x2xf32>
    %16 = tpu.matmul %15, %14, %cst_14 {dimension_numbers = #tpu.dot_dimension_numbers<[1], [0], [0], [1], [0, 0, 1, 1], [], []>} : vector<16x32xf32>, vector<32x2xf32>, vector<16x2xf32> -> vector<16x2xf32>
    %c0_15 = arith.constant 0 : index
    %c0_16 = arith.constant 0 : index
    %17 = vector.load %arg6[%c0_15, %c0_16] : memref<16x1xf32, #tpu.memory_space<vmem>>, vector<16x1xf32>
    %18 = vector.broadcast %17 : vector<16x1xf32> to vector<16x2xf32>
    %19 = arith.addf %16, %18 : vector<16x2xf32>
    %c0_17 = arith.constant 0 : index
    %c0_18 = arith.constant 0 : index
    %20 = vector.load %arg7[%c0_17, %c0_18] : memref<16x2xf32, #tpu.memory_space<vmem>>, vector<16x2xf32>
    tpu.vector_store %arg7[%c0_17, %c0_18], %19 {strides = array<i32>} : memref<16x2xf32, #tpu.memory_space<vmem>>, vector<16x2xf32>,
    return
  }
}

</mosaic_0001>

<llo_original>
// kernel: tpu_custom_call.1
$region0: #{tpu_custom_call.1}
  #allocation0 [shape = 'u32[]', space=smem, size = 0x4, offset = 0x4, fixed_abs, tag = 'smem constant byte address 0x4 - core index']
  #allocation1 [shape = 'u32[72,128]{1,0:T(1,128)}', space=vmem, size = 0x9000, scoped, tag = 'internal scratch']
  %s0 = inlined_call_operand.vmem [shape: f32[8,2], index: 0, kind: input, shape index: {}]
  %s1 = inlined_call_operand.vmem [shape: f32[32,8], index: 1, kind: input, shape index: {}]
  %s2 = inlined_call_operand.vmem [shape: f32[32,32], index: 2, kind: input, shape index: {}]
  %s3 = inlined_call_operand.vmem [shape: f32[16,32], index: 3, kind: input, shape index: {}]
  %s4 = inlined_call_operand.vmem [shape: f32[32,1], index: 4, kind: input, shape index: {}]
  %s5 = inlined_call_operand.vmem [shape: f32[32,1], index: 5, kind: input, shape index: {}]
  %s6 = inlined_call_operand.vmem [shape: f32[16,1], index: 6, kind: input, shape index: {}]
  %s7 = inlined_call_operand.vmem [shape: f32[16,2], index: 7, kind: output, shape index: {}]
  %s8 = sld [smem:[#allocation0]]
  $region38: #{tpu_custom_call.1} parent=0
    _
  %s10 = ssub.s32 1, %s8
  %s11 = scalar_select 0, %s10, %s8
  // Predicated region
  $region2: #{tpu_custom_call.1} parent=0 // pred_check
    _
  $region3: #{tpu_custom_call.1} parent=0 // pred_check_branch
    %13 = sbr.rel (0) target = $region5
  $region4: #{tpu_custom_call.1} parent=0 // pred_region
    _
  $region5: #{tpu_custom_call.1} parent=0 // pred_fallthru
    _
  // Predicated region
  $region6: #{tpu_custom_call.1} parent=0 // pred_check
    _
  $region7: #{tpu_custom_call.1} parent=0 // pred_check_branch
    %15 = sbr.rel (0) target = $region9
  $region8: #{tpu_custom_call.1} parent=0 // pred_region
    _
  $region9: #{tpu_custom_call.1} parent=0 // pred_fallthru
    _
  // Predicated region
  $region10: #{tpu_custom_call.1} parent=0 // pred_check
    _
  $region11: #{tpu_custom_call.1} parent=0 // pred_check_branch
    %17 = sbr.rel (0) target = $region13
  $region12: #{tpu_custom_call.1} parent=0 // pred_region
    _
  $region13: #{tpu_custom_call.1} parent=0 // pred_fallthru
    _
  // Predicated region
  $region14: #{tpu_custom_call.1} parent=0 // pred_check
    _
  $region15: #{tpu_custom_call.1} parent=0 // pred_check_branch
    %19 = sbr.rel (0) target = $region17
  $region16: #{tpu_custom_call.1} parent=0 // pred_region
    _
  $region17: #{tpu_custom_call.1} parent=0 // pred_fallthru
    _
  // Predicated region
  $region18: #{tpu_custom_call.1} parent=0 // pred_check
    _
  $region19: #{tpu_custom_call.1} parent=0 // pred_check_branch
    %21 = sbr.rel (0) target = $region21
  $region20: #{tpu_custom_call.1} parent=0 // pred_region
    _
  $region21: #{tpu_custom_call.1} parent=0 // pred_fallthru
    _
  // Predicated region
  $region22: #{tpu_custom_call.1} parent=0 // pred_check
    _
  $region23: #{tpu_custom_call.1} parent=0 // pred_check_branch
    %23 = sbr.rel (0) target = $region25
  $region24: #{tpu_custom_call.1} parent=0 // pred_region
    _
  $region25: #{tpu_custom_call.1} parent=0 // pred_fallthru
    _
  // Predicated region
  $region26: #{tpu_custom_call.1} parent=0 // pred_check
    _
  $region27: #{tpu_custom_call.1} parent=0 // pred_check_branch
    %25 = sbr.rel (0) target = $region29
  $region28: #{tpu_custom_call.1} parent=0 // pred_region
    _
  $region29: #{tpu_custom_call.1} parent=0 // pred_fallthru
    _
  %v26 = vld [vmem:[%s0] sm:$0xff]
  %v27 = vld [vmem:[%s1] sm:$0xff]
  %v28 = vld [vmem:[%s1 + $0x8] sm:$0xff]
  %v29 = vld [vmem:[%s1 + $0x10] sm:$0xff]
  %v30 = vld [vmem:[%s1 + $0x18] sm:$0xff]
  %v31 = vld [vmem:[%s4] sm:$0xff]
  %v32 = vld [vmem:[%s4 + $0x8] sm:$0xff]
  %v33 = vld [vmem:[%s4 + $0x10] sm:$0xff]
  %v34 = vld [vmem:[%s4 + $0x18] sm:$0xff]
  %36 = vset.pattern.permute.xlu0 0
  %37 = vperm.xlu0 %36, %v31
  %v38 = vpop.permute.xlu0 %37
  %41 = vset.pattern.permute.xlu0 0
  %42 = vperm.xlu0 %41, %v32
  %v43 = vpop.permute.xlu0 %42
  %46 = vset.pattern.permute.xlu0 0
  %47 = vperm.xlu0 %46, %v33
  %v48 = vpop.permute.xlu0 %47
  %51 = vset.pattern.permute.xlu0 0
  %52 = vperm.xlu0 %51, %v34
  %v53 = vpop.permute.xlu0 %52
  %vm55 = vcmask 64512
  %v57 = vsel %vm55, %v27, 0
  %v60 = vsel %vm55, %v28, 0
  %v63 = vsel %vm55, %v29, 0
  %v66 = vsel %vm55, %v30, 0
  %68 = vmatpush.msra.mxu0 0.0
  %69 = vmatpush.msra.mxu0 0.0
  %70 = vmatpush.msra.mxu0 0.0
  %71 = vmatpush.msra.mxu0 0.0
  %72 = vmatpush.msra.mxu0 0.0
  %73 = vmatpush.msra.mxu0 0.0
  %74 = vmatpush.msra.mxu0 0.0
  %75 = vmatpush.msra.mxu0 0.0
  %76 = vmatpush.msra.mxu0 0.0
  %77 = vmatpush.msra.mxu0 0.0
  %78 = vmatpush.msra.mxu0 0.0
  %79 = vmatpush.msra.mxu0 0.0
  %80 = vmatpush.msra.mxu0 0.0
  %81 = vmatpush.msra.mxu0 0.0
  %82 = vmatpush.msra.mxu0 0.0
  %83 = vmatpush.msra.mxu0 %v26
  %84 = vmatmul.f32.gmra.mxu0 %v57
  %v85 = vpop.f32.mrf.mxu0
  %v86 = vadd.f32 %v38, %v85
  %87 = vmatmul.f32.gmra.mxu0 %v60
  %v88 = vpop.f32.mrf.mxu0
  %v89 = vadd.f32 %v43, %v88
  %90 = vmatmul.f32.gmra.mxu0 %v63
  %v91 = vpop.f32.mrf.mxu0
  %v92 = vadd.f32 %v48, %v91
  %93 = vmatmul.f32.gmra.mxu0 %v66
  %v94 = vpop.f32.mrf.mxu0
  %v95 = vadd.f32 %v53, %v94
  %96 = vdwg.mxu0
  %v97 = vmax.f32 %v86, 0.0
  %v98 = vmax.f32 %v89, 0.0
  %v99 = vmax.f32 %v92, 0.0
  %v100 = vmax.f32 %v95, 0.0
  %v101 = vld [vmem:[%s2] sm:$0xff]
  %v102 = vld [vmem:[%s2 + $0x8] sm:$0xff]
  %v103 = vld [vmem:[%s2 + $0x10] sm:$0xff]
  %v104 = vld [vmem:[%s2 + $0x18] sm:$0xff]
  %v105 = vld [vmem:[%s5] sm:$0xff]
  %v106 = vld [vmem:[%s5 + $0x8] sm:$0xff]
  %v107 = vld [vmem:[%s5 + $0x10] sm:$0xff]
  %v108 = vld [vmem:[%s5 + $0x18] sm:$0xff]
  %110 = vset.pattern.permute.xlu0 0
  %111 = vperm.xlu0 %110, %v105
  %v112 = vpop.permute.xlu0 %111
  %115 = vset.pattern.permute.xlu0 0
  %116 = vperm.xlu0 %115, %v106
  %v117 = vpop.permute.xlu0 %116
  %120 = vset.pattern.permute.xlu0 0
  %121 = vperm.xlu0 %120, %v107
  %v122 = vpop.permute.xlu0 %121
  %125 = vset.pattern.permute.xlu0 0
  %126 = vperm.xlu0 %125, %v108
  %v127 = vpop.permute.xlu0 %126
  %vm129 = vcmask 261120
  %v131 = vsel %vm129, %v101, 0
  %v134 = vsel %vm129, %v102, 0
  %v137 = vsel %vm129, %v103, 0
  %v140 = vsel %vm129, %v104, 0
  %142 = vmatpush.msra.mxu0 0.0
  %143 = vmatpush.msra.mxu0 0.0
  %144 = vmatpush.msra.mxu0 0.0
  %145 = vmatpush.msra.mxu0 0.0
  %146 = vmatpush.msra.mxu0 0.0
  %147 = vmatpush.msra.mxu0 0.0
  %148 = vmatpush.msra.mxu0 0.0
  %149 = vmatpush.msra.mxu0 0.0
  %150 = vmatpush.msra.mxu0 0.0
  %151 = vmatpush.msra.mxu0 0.0
  %152 = vmatpush.msra.mxu0 0.0
  %153 = vmatpush.msra.mxu0 0.0
  %154 = vmatpush.msra.mxu0 %v100
  %155 = vmatpush.msra.mxu0 %v99
  %156 = vmatpush.msra.mxu0 %v98
  %157 = vmatpush.msra.mxu0 %v97
  %158 = vmatmul.f32.gmra.mxu0 %v131
  %v159 = vpop.f32.mrf.mxu0
  %v160 = vadd.f32 %v112, %v159
  %161 = vmatmul.f32.gmra.mxu0 %v134
  %v162 = vpop.f32.mrf.mxu0
  %v163 = vadd.f32 %v117, %v162
  %164 = vmatmul.f32.gmra.mxu0 %v137
  %v165 = vpop.f32.mrf.mxu0
  %v166 = vadd.f32 %v122, %v165
  %167 = vmatmul.f32.gmra.mxu0 %v140
  %v168 = vpop.f32.mrf.mxu0
  %v169 = vadd.f32 %v127, %v168
  %170 = vdwg.mxu0
  %v171 = vmax.f32 %v160, 0.0
  %v172 = vmax.f32 %v163, 0.0
  %v173 = vmax.f32 %v166, 0.0
  %v174 = vmax.f32 %v169, 0.0
  %v175 = vld [vmem:[%s3] sm:$0xff]
  %v176 = vld [vmem:[%s3 + $0x8] sm:$0xff]
  %v177 = vld [vmem:[%s6] sm:$0xff]
  %v178 = vld [vmem:[%s6 + $0x8] sm:$0xff]
  %180 = vset.pattern.permute.xlu0 0
  %181 = vperm.xlu0 %180, %v177
  %v182 = vpop.permute.xlu0 %181
  %185 = vset.pattern.permute.xlu0 0
  %186 = vperm.xlu0 %185, %v178
  %v187 = vpop.permute.xlu0 %186
  %v190 = vsel %vm129, %v175, 0
  %v193 = vsel %vm129, %v176, 0
  %195 = vmatpush.msra.mxu0 0.0
  %196 = vmatpush.msra.mxu0 0.0
  %197 = vmatpush.msra.mxu0 0.0
  %198 = vmatpush.msra.mxu0 0.0
  %199 = vmatpush.msra.mxu0 0.0
  %200 = vmatpush.msra.mxu0 0.0
  %201 = vmatpush.msra.mxu0 0.0
  %202 = vmatpush.msra.mxu0 0.0
  %203 = vmatpush.msra.mxu0 0.0
  %204 = vmatpush.msra.mxu0 0.0
  %205 = vmatpush.msra.mxu0 0.0
  %206 = vmatpush.msra.mxu0 0.0
  %207 = vmatpush.msra.mxu0 %v174
  %208 = vmatpush.msra.mxu0 %v173
  %209 = vmatpush.msra.mxu0 %v172
  %210 = vmatpush.msra.mxu0 %v171
  %211 = vmatmul.f32.gmra.mxu0 %v190
  %v212 = vpop.f32.mrf.mxu0
  %v213 = vadd.f32 %v182, %v212
  %214 = vmatmul.f32.gmra.mxu0 %v193
  %v215 = vpop.f32.mrf.mxu0
  %v216 = vadd.f32 %v187, %v215
  %217 = vdwg.mxu0
  %vm218 = vcmask 15360
  %219 = vst.msk [vmem:[%s7] sm:$0xff] %vm218, %v213
  %220 = vst.msk [vmem:[%s7 + $0x8] sm:$0xff] %vm218, %v216
  // Predicated region
  $region30: #{tpu_custom_call.1} parent=0 // pred_check
    _
  $region31: #{tpu_custom_call.1} parent=0 // pred_check_branch
    %222 = sbr.rel (0) target = $region33
  $region32: #{tpu_custom_call.1} parent=0 // pred_region
    _
  $region33: #{tpu_custom_call.1} parent=0 // pred_fallthru
    _
  // Predicated region
  $region34: #{tpu_custom_call.1} parent=0 // pred_check
    _
  $region35: #{tpu_custom_call.1} parent=0 // pred_check_branch
    %224 = sbr.rel (0) target = $region37
  $region36: #{tpu_custom_call.1} parent=0 // pred_region
    _
  $region37: #{tpu_custom_call.1} parent=0 // pred_fallthru
    _

</llo_original>
